<compile_context>
chip_gen: v5e
topology: v5e:2x2
jax: 0.10.0
libtpu: 0.0.40
codegen_flags: <defaults>
</compile_context>

<pallas_src>
import functools

import jax
import jax.numpy as jnp
from jax.experimental import pallas as pl
from jax.experimental.pallas import tpu as pltpu

_MiB = 1024 * 1024

_ACTS = {
    "relu": lambda y: jnp.maximum(y, 0.0),
    "lrelu": lambda y: jnp.where(y >= 0.0, y, 0.01 * y),  # LeakyReLU default slope
    "sigmoid": jax.nn.sigmoid,
    "tanh": jnp.tanh,
}


def _round_up(x, m):
    return ((x + m - 1) // m) * m


def _pick_tile(dim, unit, preferred):
    """Return (tile, padded_dim): tile is a multiple of `unit` that divides padded_dim."""
    padded = _round_up(dim, unit)
    if padded <= preferred:
        return padded, padded
    tile = preferred
    while padded % tile != 0:  # terminates at tile == unit in the worst case
        tile -= unit
    return tile, padded


def _vmem_limit(nbytes, *, margin=4 * _MiB, lo=16 * _MiB, hi=48 * _MiB):
    # Explicit scoped-VMEM budget; capped at 48 MiB so the same config is safe
    # on v7x (64 MiB physical VMEM) as well as v5e/v6e (128 MiB).
    return int(min(max(nbytes + margin, lo), hi))


# ----------------------------------------------------------------------------
# Path 1: whole-MLP fusion (weights resident in VMEM, one pallas_call).
# ----------------------------------------------------------------------------
def _fused_mlp_kernel(x_ref, *refs, activation, n_layers):
    o_ref = refs[2 * n_layers]
    act = _ACTS[activation]
    h = x_ref[...]
    for l in range(n_layers):
        w_ref = refs[2 * l]
        b_ref = refs[2 * l + 1]
        h = jnp.dot(h, w_ref[...], preferred_element_type=jnp.float32) + b_ref[...]
        h = act(h)
    o_ref[...] = h.astype(o_ref.dtype)


def mlp_fused(x, params, *, activation="relu", tm=256, compute_dtype=None):
    """Run all MLP layers in one kernel. x:(M, D0), params = [(W_i, b_i), ...]."""
    M, D0 = x.shape
    out_dtype = x.dtype
    if compute_dtype is not None:  # optional bf16 compute; f32 accumulation kept
        x = x.astype(compute_dtype)
        params = [(w.astype(compute_dtype), b) for w, b in params]

    # Rows padded to a multiple of 8 (and tm) so block shapes satisfy (8,128).
    tm, Mp = _pick_tile(M, 8, tm)
    if Mp != M:
        x = jnp.pad(x, ((0, Mp - M), (0, 0)))

    dims = [D0] + [w.shape[1] for w, _ in params]
    n_layers = len(params)

    flat_args = [x]
    in_specs = [pl.BlockSpec((tm, D0), lambda i: (i, 0))]
    for w, b in params:
        flat_args.append(w)
        flat_args.append(b.reshape(1, -1).astype(jnp.float32))
        # Full-array blocks -> weights/biases stay resident across the M grid.
        in_specs.append(pl.BlockSpec(w.shape, lambda i: (0, 0)))
        in_specs.append(pl.BlockSpec((1, b.shape[0]), lambda i: (0, 0)))

    esz = jnp.dtype(x.dtype).itemsize
    param_bytes = sum(
        w.size * jnp.dtype(w.dtype).itemsize + b.size * 4 for w, b in params
    )
    vmem = _vmem_limit(
        2 * tm * D0 * esz                                   # double-buffered input tile
        + 2 * param_bytes                                   # resident weights/biases
        + 2 * tm * dims[-1] * jnp.dtype(out_dtype).itemsize  # double-buffered output
        + 2 * tm * max(dims) * 4                            # f32 intermediates
    )

    kernel = functools.partial(
        _fused_mlp_kernel, activation=activation, n_layers=n_layers
    )
    out = pl.pallas_call(
        kernel,
        out_shape=jax.ShapeDtypeStruct((Mp, dims[-1]), out_dtype),
        grid_spec=pltpu.PrefetchScalarGridSpec(
            num_scalar_prefetch=0,
            grid=(Mp // tm,),
            in_specs=in_specs,
            out_specs=pl.BlockSpec((tm, dims[-1]), lambda i: (i, 0)),
        ),
        compiler_params=pltpu.CompilerParams(
            dimension_semantics=("parallel",),  # M blocks shard across v7x dual TCs
            vmem_limit_bytes=vmem,
        ),
    )(*flat_args)
    return out[:M]


# ----------------------------------------------------------------------------
# Path 2: general tiled linear + activation (fallback for large layers).
# ----------------------------------------------------------------------------
def _linear_act_single_k_kernel(x_ref, w_ref, b_ref, o_ref, *, activation):
    # No K split -> no accumulator scratch, no init/finalize phases.
    y = jnp.dot(x_ref[...], w_ref[...], preferred_element_type=jnp.float32)
    o_ref[...] = _ACTS[activation](y + b_ref[...]).astype(o_ref.dtype)


def _linear_act_multi_k_kernel(x_ref, w_ref, b_ref, o_ref, acc_ref, *, activation):
    k = pl.program_id(2)

    @pl.when(k == 0)
    def _():
        acc_ref[...] = jnp.zeros_like(acc_ref)

    acc_ref[...] += jnp.dot(x_ref[...], w_ref[...], preferred_element_type=jnp.float32)

    @pl.when(k == pl.num_programs(2) - 1)
    def _():
        o_ref[...] = _ACTS[activation](acc_ref[...] + b_ref[...]).astype(o_ref.dtype)


def linear_act(x, w, b, *, activation="relu", tm=256, tn=512, tk=1024,
               compute_dtype=None):
    """y = activation(x @ w + b). x:(M,K) w:(K,N) b:(N,). Ragged shapes padded."""
    M, K = x.shape
    Kw, N = w.shape
    assert K == Kw and b.shape == (N,)
    out_dtype = x.dtype
    if compute_dtype is not None:
        x = x.astype(compute_dtype)
        w = w.astype(compute_dtype)

    # MXU-sized tiles, shrunk only as needed to divide the padded dims.
    tm, Mp = _pick_tile(M, 8, tm)
    tn, Np = _pick_tile(N, 128, tn)
    tk, Kp = _pick_tile(K, 128, tk)

    if (Mp, Kp) != (M, K):
        x = jnp.pad(x, ((0, Mp - M), (0, Kp - K)))
    if (Kp, Np) != (K, N):
        w = jnp.pad(w, ((0, Kp - K), (0, Np - N)))
    b2 = jnp.pad(b, (0, Np - N)).reshape(1, Np).astype(jnp.float32)

    n_k = Kp // tk
    esz = jnp.dtype(x.dtype).itemsize
    vmem = _vmem_limit(
        2 * (tm * tk + tk * tn) * esz                      # double-buffered x, w tiles
        + 2 * tn * 4                                       # bias tile
        + tm * tn * 4                                      # f32 accumulator
        + 2 * tm * tn * jnp.dtype(out_dtype).itemsize      # double-buffered output
    )

    if n_k == 1:
        out = pl.pallas_call(
            functools.partial(_linear_act_single_k_kernel, activation=activation),
            out_shape=jax.ShapeDtypeStruct((Mp, Np), out_dtype),
            grid_spec=pltpu.PrefetchScalarGridSpec(
                num_scalar_prefetch=0,
                grid=(Mp // tm, Np // tn),
                in_specs=[
                    pl.BlockSpec((tm, tk), lambda i, j: (i, 0)),
                    pl.BlockSpec((tk, tn), lambda i, j: (0, j)),
                    pl.BlockSpec((1, tn), lambda i, j: (0, j)),
                ],
                out_specs=pl.BlockSpec((tm, tn), lambda i, j: (i, j)),
            ),
            compiler_params=pltpu.CompilerParams(
                dimension_semantics=("parallel", "parallel"),
                vmem_limit_bytes=vmem,
            ),
        )(x, w, b2)
    else:
        out = pl.pallas_call(
            functools.partial(_linear_act_multi_k_kernel, activation=activation),
            out_shape=jax.ShapeDtypeStruct((Mp, Np), out_dtype),
            grid_spec=pltpu.PrefetchScalarGridSpec(
                num_scalar_prefetch=0,
                grid=(Mp // tm, Np // tn, n_k),
                in_specs=[
                    pl.BlockSpec((tm, tk), lambda i, j, k: (i, k)),
                    pl.BlockSpec((tk, tn), lambda i, j, k: (k, j)),
                    pl.BlockSpec((1, tn), lambda i, j, k: (0, j)),
                ],
                out_specs=pl.BlockSpec((tm, tn), lambda i, j, k: (i, j)),
                scratch_shapes=[pltpu.VMEM((tm, tn), jnp.float32)],
            ),
            compiler_params=pltpu.CompilerParams(
                dimension_semantics=("parallel", "parallel", "arbitrary"),
                vmem_limit_bytes=vmem,
            ),
        )(x, w, b2)
    return out[:M, :N]


# ----------------------------------------------------------------------------
# Module wrapper mirroring the PyTorch MLP.
# ----------------------------------------------------------------------------
class MLPPallas:
    """[Linear, activation, Dropout(drop_prob)] per layer; drop_prob=0 -> identity."""

    _FUSE_PARAM_BYTES = 8 * _MiB  # keep all weights resident well within VMEM

    def __init__(self, input_dim, hidden_dims, activation="relu",
                 drop_prob=0.0, batch_norm=False, key=None, compute_dtype=None):
        assert drop_prob == 0.0, "Dropout(p=0) is identity; p>0 not needed here."
        assert not batch_norm  # TODO(synk): BatchNorm1d (batch_norm=True) not implemented.
        assert activation in _ACTS
        self.activation = activation
        self.compute_dtype = compute_dtype
        dims = [input_dim] + list(hidden_dims)
        self.params = []
        key = key if key is not None else jax.random.PRNGKey(0)
        for m, n in zip(dims, dims[1:]):
            key, kw, kb = jax.random.split(key, 3)
            bound = 1.0 / (m ** 0.5)  # torch.nn.Linear default init range
            w = jax.random.uniform(kw, (m, n), jnp.float32, -bound, bound)
            b = jax.random.uniform(kb, (n,), jnp.float32, -bound, bound)
            self.params.append((w, b))

    def __call__(self, x):
        param_bytes = sum(
            w.size * jnp.dtype(w.dtype).itemsize + b.size * jnp.dtype(b.dtype).itemsize
            for w, b in self.params
        )
        if param_bytes <= self._FUSE_PARAM_BYTES:
            return mlp_fused(x, self.params, activation=self.activation,
                             compute_dtype=self.compute_dtype)
        for w, b in self.params:
            x = linear_act(x, w, b, activation=self.activation,
                           compute_dtype=self.compute_dtype)
        return x


def mlp_ref(x, params, activation="relu"):
    """Pure-JAX reference for correctness checking."""
    act = _ACTS[activation]
    for w, b in params:
        x = act(x @ w + b)
    return x


if __name__ == "__main__":
    key = jax.random.PRNGKey(0)

    # 1) Fused whole-MLP path: batch=8, input_dim=256, hidden_dims=[128, 64].
    B, D_IN, HIDDEN = 8, 256, [128, 64]
    key, kx, kp = jax.random.split(key, 3)
    x = jax.random.normal(kx, (B, D_IN), dtype=jnp.float32)
    model = MLPPallas(D_IN, HIDDEN, activation="relu", drop_prob=0.0,
                      batch_norm=False, key=kp)
    y = jax.block_until_ready(model(x))
    y_ref = mlp_ref(x, model.params, activation="relu")
    assert y.shape == (B, HIDDEN[-1])
    assert jnp.allclose(y, y_ref, atol=1e-4, rtol=1e-4), "fused MLP mismatch"

    # 2) General tiled path with ragged, non-(8,128)-aligned shapes (padding path).
    key, kx2, kw2, kb2 = jax.random.split(key, 4)
    M2, K2, N2 = 40, 200, 136
    x2 = jax.random.normal(kx2, (M2, K2), dtype=jnp.float32)
    w2 = jax.random.normal(kw2, (K2, N2), dtype=jnp.float32) * 0.05
    b2 = jax.random.normal(kb2, (N2,), dtype=jnp.float32)
    y2 = jax.block_until_ready(linear_act(x2, w2, b2, activation="relu"))
    y2_ref = jnp.maximum(x2 @ w2 + b2, 0.0)
    assert jnp.allclose(y2, y2_ref, atol=1e-4, rtol=1e-4), "single-K path mismatch"

    # 3) Same shapes with forced small tk to exercise the K-split accumulator path.
    y3 = jax.block_until_ready(
        linear_act(x2, w2, b2, activation="relu", tm=16, tn=128, tk=128))
    assert jnp.allclose(y3, y2_ref, atol=1e-4, rtol=1e-4), "multi-K path mismatch"

    print("KERNEL_OK")
</pallas_src>

<mosaic_0001>
module attributes {stable_mosaic.version = 11 : i64} {
  func.func @_fused_mlp_kernel(%arg0: i32, %arg1: memref<8x256xf32, #tpu.memory_space<vmem>>, %arg2: memref<256x128xf32, #tpu.memory_space<vmem>>, %arg3: memref<1x128xf32, #tpu.memory_space<vmem>>, %arg4: memref<128x64xf32, #tpu.memory_space<vmem>>, %arg5: memref<1x64xf32, #tpu.memory_space<vmem>>, %arg6: memref<8x64xf32, #tpu.memory_space<vmem>>) attributes {dimension_semantics = [#tpu.dimension_semantics<parallel>], iteration_bounds = array<i64: 1>, scalar_prefetch = 0 : i64, scratch_operands = 0 : i64, tpu.core_type = #tpu.core_type<tc>, window_params = [{transform_indices = @transform_0, window_bounds = array<i64: 8, 256>}, {pipeline_mode = #tpu.pipeline_mode<synchronous>, transform_indices = @transform_1, window_bounds = array<i64: 256, 128>}, {pipeline_mode = #tpu.pipeline_mode<synchronous>, transform_indices = @transform_2, window_bounds = array<i64: 1, 128>}, {pipeline_mode = #tpu.pipeline_mode<synchronous>, transform_indices = @transform_3, window_bounds = array<i64: 128, 64>}, {pipeline_mode = #tpu.pipeline_mode<synchronous>, transform_indices = @transform_4, window_bounds = array<i64: 1, 64>}, {transform_indices = @transform_5, window_bounds = array<i64: 8, 64>}]} {
    %c0 = arith.constant 0 : index
    %c0_0 = arith.constant 0 : index
    %0 = vector.load %arg1[%c0, %c0_0] : memref<8x256xf32, #tpu.memory_space<vmem>>, vector<8x256xf32>
    %c0_1 = arith.constant 0 : index
    %c0_2 = arith.constant 0 : index
    %1 = vector.load %arg2[%c0_1, %c0_2] : memref<256x128xf32, #tpu.memory_space<vmem>>, vector<256x128xf32>
    %cst = arith.constant dense<0.000000e+00> : vector<8x128xf32>
    %2 = tpu.matmul %0, %1, %cst {dimension_numbers = #tpu.dot_dimension_numbers<[1], [0], [0], [1], [0, 0, 1, 1], [], []>} : vector<8x256xf32>, vector<256x128xf32>, vector<8x128xf32> -> vector<8x128xf32>
    %c0_3 = arith.constant 0 : index
    %c0_4 = arith.constant 0 : index
    %3 = vector.load %arg3[%c0_3, %c0_4] : memref<1x128xf32, #tpu.memory_space<vmem>>, vector<1x128xf32>
    %4 = vector.broadcast %3 : vector<1x128xf32> to vector<8x128xf32>
    %5 = arith.addf %2, %4 : vector<8x128xf32>
    %cst_5 = arith.constant 0.000000e+00 : f32
    %6 = vector.broadcast %cst_5 : f32 to vector<8x128xf32>
    %7 = arith.maximumf %5, %6 : vector<8x128xf32>
    %c0_6 = arith.constant 0 : index
    %c0_7 = arith.constant 0 : index
    %8 = vector.load %arg4[%c0_6, %c0_7] : memref<128x64xf32, #tpu.memory_space<vmem>>, vector<128x64xf32>
    %cst_8 = arith.constant dense<0.000000e+00> : vector<8x64xf32>
    %9 = tpu.matmul %7, %8, %cst_8 {dimension_numbers = #tpu.dot_dimension_numbers<[1], [0], [0], [1], [0, 0, 1, 1], [], []>} : vector<8x128xf32>, vector<128x64xf32>, vector<8x64xf32> -> vector<8x64xf32>
    %c0_9 = arith.constant 0 : index
    %c0_10 = arith.constant 0 : index
    %10 = vector.load %arg5[%c0_9, %c0_10] : memref<1x64xf32, #tpu.memory_space<vmem>>, vector<1x64xf32>
    %11 = vector.broadcast %10 : vector<1x64xf32> to vector<8x64xf32>
    %12 = arith.addf %9, %11 : vector<8x64xf32>
    %cst_11 = arith.constant 0.000000e+00 : f32
    %13 = vector.broadcast %cst_11 : f32 to vector<8x64xf32>
    %14 = arith.maximumf %12, %13 : vector<8x64xf32>
    %c0_12 = arith.constant 0 : index
    %c0_13 = arith.constant 0 : index
    %15 = vector.load %arg6[%c0_12, %c0_13] : memref<8x64xf32, #tpu.memory_space<vmem>>, vector<8x64xf32>
    tpu.vector_store %arg6[%c0_12, %c0_13], %14 {strides = array<i32>} : memref<8x64xf32, #tpu.memory_space<vmem>>, vector<8x64xf32>,
    return
  }
  func.func @transform_0(%arg0: i32) -> (i32, i32) {
    %c0_i32 = arith.constant 0 : i32
    %c0_i32_0 = arith.constant 0 : i32
    return %arg0, %c0_i32 : i32, i32
  }
  func.func @transform_1(%arg0: i32) -> (i32, i32) {
    %c0_i32 = arith.constant 0 : i32
    %c0_i32_0 = arith.constant 0 : i32
    %c0_i32_1 = arith.constant 0 : i32
    return %c0_i32, %c0_i32_0 : i32, i32
  }
  func.func @transform_2(%arg0: i32) -> (i32, i32) {
    %c0_i32 = arith.constant 0 : i32
    %c0_i32_0 = arith.constant 0 : i32
    %c0_i32_1 = arith.constant 0 : i32
    return %c0_i32, %c0_i32_0 : i32, i32
  }
  func.func @transform_3(%arg0: i32) -> (i32, i32) {
    %c0_i32 = arith.constant 0 : i32
    %c0_i32_0 = arith.constant 0 : i32
    %c0_i32_1 = arith.constant 0 : i32
    return %c0_i32, %c0_i32_0 : i32, i32
  }
  func.func @transform_4(%arg0: i32) -> (i32, i32) {
    %c0_i32 = arith.constant 0 : i32
    %c0_i32_0 = arith.constant 0 : i32
    %c0_i32_1 = arith.constant 0 : i32
    return %c0_i32, %c0_i32_0 : i32, i32
  }
  func.func @transform_5(%arg0: i32) -> (i32, i32) {
    %c0_i32 = arith.constant 0 : i32
    %c0_i32_0 = arith.constant 0 : i32
    return %arg0, %c0_i32 : i32, i32
  }
}

</mosaic_0001>

<llo_original>
// kernel: tpu_custom_call.1
$region0: #{tpu_custom_call.1}
  #allocation0 [shape = 'u32[]', space=smem, size = 0x4, offset = 0x4, fixed_abs, tag = 'smem constant byte address 0x4 - core index']
  #allocation1 [shape = 'u32[72,128]{1,0:T(1,128)}', space=vmem, size = 0x9000, scoped, tag = 'internal scratch']
  %s0 = inlined_call_operand.vmem [shape: f32[8,256], index: 0, kind: input, shape index: {}]
  %s1 = inlined_call_operand.hbm [shape: f32[256,128], index: 1, kind: input, shape index: {}]
  %s2 = inlined_call_operand.vmem [shape: f32[1,128], index: 2, kind: input, shape index: {}]
  %s3 = inlined_call_operand.vmem [shape: f32[128,64], index: 3, kind: input, shape index: {}]
  %s4 = inlined_call_operand.vmem [shape: f32[1,64], index: 4, kind: input, shape index: {}]
  %s5 = inlined_call_operand.hbm [shape: f32[8,64], index: 5, kind: output, shape index: {}]
  %s6 = sld [smem:[#allocation0]]
  $region34: #{tpu_custom_call.1} parent=0
    _
  %s8 = ssub.s32 1, %s6
  %s9 = scalar_select 0, %s8, %s6
  $region1: #{tpu_custom_call.1} parent=0
    #allocation2 [shape = 'u8[131072]{0}', space=vmem, size = 0x20000, scoped, tag = 'input window, operand 1, single buffered']
    #allocation3 [shape = 's32[1]{0}', space=sflag, size = 0x4, scoped, tag = 'scoped memory for tpu_custom_call.1']
    #allocation4 [shape = 's32[1]{0}', space=sflag, size = 0x4, scoped, tag = 'scoped memory for tpu_custom_call.1']
    #allocation5 [shape = 'u8[4096]{0}', space=vmem, size = 0x1000, scoped, tag = 'output window, operand 0, single buffered']
    %10 = vsyncpa [#allocation3], 0
    %11 = vsyncpa [#allocation4], 0
    // Predicated region
    $region2: #{tpu_custom_call.1} parent=1 // pred_check
      _
    $region3: #{tpu_custom_call.1} parent=1 // pred_check_branch
      %13 = sbr.rel (0) target = $region5
    $region4: #{tpu_custom_call.1} parent=1 // pred_region
      _
    $region5: #{tpu_custom_call.1} parent=1 // pred_fallthru
      _
    // Predicated region
    $region6: #{tpu_custom_call.1} parent=1 // pred_check
      _
    $region7: #{tpu_custom_call.1} parent=1 // pred_check_branch
      %15 = sbr.rel (0) target = $region9
    $region8: #{tpu_custom_call.1} parent=1 // pred_region
      %17 = vsyncadd [#allocation3], 0
      %s18 = sshll.u32 %s1, 4
      %s19 = int_to_ptr.hbm [resolvable:$true] %s18
      %s20 = sshll.u32 [#allocation2], 4
      %s21 = int_to_ptr.vmem [resolvable:$true] %s20
      %26 = dma.hbm_to_vmem [thread:$0]  %s19, 4096, %s21, [#allocation3], 128, 128, 8
    $region9: #{tpu_custom_call.1} parent=1 // pred_fallthru
      _
    // Predicated region
    $region10: #{tpu_custom_call.1} parent=1 // pred_check
      _
    $region11: #{tpu_custom_call.1} parent=1 // pred_check_branch
      %28 = sbr.rel (0) target = $region13
    $region12: #{tpu_custom_call.1} parent=1 // pred_region
      _
    $region13: #{tpu_custom_call.1} parent=1 // pred_fallthru
      _
    // Predicated region
    $region14: #{tpu_custom_call.1} parent=1 // pred_check
      _
    $region15: #{tpu_custom_call.1} parent=1 // pred_check_branch
      %30 = sbr.rel (0) target = $region17
    $region16: #{tpu_custom_call.1} parent=1 // pred_region
      _
    $region17: #{tpu_custom_call.1} parent=1 // pred_fallthru
      _
    // Predicated region
    $region18: #{tpu_custom_call.1} parent=1 // pred_check
      _
    $region19: #{tpu_custom_call.1} parent=1 // pred_check_branch
      %32 = sbr.rel (0) target = $region21
    $region20: #{tpu_custom_call.1} parent=1 // pred_region
      _
    $region21: #{tpu_custom_call.1} parent=1 // pred_fallthru
      _
    // Predicated region
    $region22: #{tpu_custom_call.1} parent=1 // pred_check
      _
    $region23: #{tpu_custom_call.1} parent=1 // pred_check_branch
      %34 = sbr.rel (0) target = $region25
    $region24: #{tpu_custom_call.1} parent=1 // pred_region
      %36 = dma.done [#allocation3], 4096
    $region25: #{tpu_custom_call.1} parent=1 // pred_fallthru
      _
    %v37 = vld [vmem:[%s0] sm:$0xff]
    %v38 = vld [vmem:[%s0 + $0x8] sm:$0xff]
    %v39 = vld [vmem:[#allocation2] sm:$0xff]
    %v40 = vld [vmem:[#allocation2 + $0x8] sm:$0xff]
    %v41 = vld [vmem:[#allocation2 + $0x10] sm:$0xff]
    %v42 = vld [vmem:[#allocation2 + $0x18] sm:$0xff]
    %v43 = vld [vmem:[#allocation2 + $0x20] sm:$0xff]
    %v44 = vld [vmem:[#allocation2 + $0x28] sm:$0xff]
    %v45 = vld [vmem:[#allocation2 + $0x30] sm:$0xff]
    %v46 = vld [vmem:[#allocation2 + $0x38] sm:$0xff]
    %v47 = vld [vmem:[#allocation2 + $0x40] sm:$0xff]
    %v48 = vld [vmem:[#allocation2 + $0x48] sm:$0xff]
    %v49 = vld [vmem:[#allocation2 + $0x50] sm:$0xff]
    %v50 = vld [vmem:[#allocation2 + $0x58] sm:$0xff]
    %v51 = vld [vmem:[#allocation2 + $0x60] sm:$0xff]
    %v52 = vld [vmem:[#allocation2 + $0x68] sm:$0xff]
    %v53 = vld [vmem:[#allocation2 + $0x70] sm:$0xff]
    %v54 = vld [vmem:[#allocation2 + $0x78] sm:$0xff]
    %v55 = vld [vmem:[#allocation2 + $0x80] sm:$0xff]
    %v56 = vld [vmem:[#allocation2 + $0x88] sm:$0xff]
    %v57 = vld [vmem:[#allocation2 + $0x90] sm:$0xff]
    %v58 = vld [vmem:[#allocation2 + $0x98] sm:$0xff]
    %v59 = vld [vmem:[#allocation2 + $0xa0] sm:$0xff]
    %v60 = vld [vmem:[#allocation2 + $0xa8] sm:$0xff]
    %v61 = vld [vmem:[#allocation2 + $0xb0] sm:$0xff]
    %v62 = vld [vmem:[#allocation2 + $0xb8] sm:$0xff]
    %v63 = vld [vmem:[#allocation2 + $0xc0] sm:$0xff]
    %v64 = vld [vmem:[#allocation2 + $0xc8] sm:$0xff]
    %v65 = vld [vmem:[#allocation2 + $0xd0] sm:$0xff]
    %v66 = vld [vmem:[#allocation2 + $0xd8] sm:$0xff]
    %v67 = vld [vmem:[#allocation2 + $0xe0] sm:$0xff]
    %v68 = vld [vmem:[#allocation2 + $0xe8] sm:$0xff]
    %v69 = vld [vmem:[#allocation2 + $0xf0] sm:$0xff]
    %v70 = vld [vmem:[#allocation2 + $0xf8] sm:$0xff]
    %v71 = vld [vmem:[%s2] sm:$0x1]
    %v73 = vperm.slane %v71, 0
    %75 = vmatpush.msra.mxu0 %v54
    %76 = vmatpush.msra.mxu0 %v53
    %77 = vmatpush.msra.mxu0 %v52
    %78 = vmatpush.msra.mxu0 %v51
    %79 = vmatpush.msra.mxu0 %v50
    %80 = vmatpush.msra.mxu0 %v49
    %81 = vmatpush.msra.mxu0 %v48
    %82 = vmatpush.msra.mxu0 %v47
    %83 = vmatpush.msra.mxu0 %v46
    %84 = vmatpush.msra.mxu0 %v45
    %85 = vmatpush.msra.mxu0 %v44
    %86 = vmatpush.msra.mxu0 %v43
    %87 = vmatpush.msra.mxu0 %v42
    %88 = vmatpush.msra.mxu0 %v41
    %89 = vmatpush.msra.mxu0 %v40
    %90 = vmatpush.msra.mxu0 %v39
    %91 = vmatmul.f32.gmra.mxu0 %v37
    %v92 = vpop.f32.mrf.mxu0
    %v93 = vadd.f32 %v73, %v92
    %94 = vdwg.mxu0
    %95 = vmatpush.msra.mxu0 %v70
    %96 = vmatpush.msra.mxu0 %v69
    %97 = vmatpush.msra.mxu0 %v68
    %98 = vmatpush.msra.mxu0 %v67
    %99 = vmatpush.msra.mxu0 %v66
    %100 = vmatpush.msra.mxu0 %v65
    %101 = vmatpush.msra.mxu0 %v64
    %102 = vmatpush.msra.mxu0 %v63
    %103 = vmatpush.msra.mxu0 %v62
    %104 = vmatpush.msra.mxu0 %v61
    %105 = vmatpush.msra.mxu0 %v60
    %106 = vmatpush.msra.mxu0 %v59
    %107 = vmatpush.msra.mxu0 %v58
    %108 = vmatpush.msra.mxu0 %v57
    %109 = vmatpush.msra.mxu0 %v56
    %110 = vmatpush.msra.mxu0 %v55
    %111 = vmatmul.f32.gmra.mxu0 %v38
    %v112 = vpop.f32.mrf.mxu0
    %v113 = vadd.f32 %v93, %v112
    %114 = vdwg.mxu0
    %v115 = vmax.f32 %v113, 0.0
    %v116 = vld [vmem:[%s3] sm:$0xff]
    %v117 = vld [vmem:[%s3 + $0x8] sm:$0xff]
    %v118 = vld [vmem:[%s3 + $0x10] sm:$0xff]
    %v119 = vld [vmem:[%s3 + $0x18] sm:$0xff]
    %v120 = vld [vmem:[%s3 + $0x20] sm:$0xff]
    %v121 = vld [vmem:[%s3 + $0x28] sm:$0xff]
    %v122 = vld [vmem:[%s3 + $0x30] sm:$0xff]
    %v123 = vld [vmem:[%s3 + $0x38] sm:$0xff]
    %v124 = vld [vmem:[%s3 + $0x40] sm:$0xff]
    %v125 = vld [vmem:[%s3 + $0x48] sm:$0xff]
    %v126 = vld [vmem:[%s3 + $0x50] sm:$0xff]
    %v127 = vld [vmem:[%s3 + $0x58] sm:$0xff]
    %v128 = vld [vmem:[%s3 + $0x60] sm:$0xff]
    %v129 = vld [vmem:[%s3 + $0x68] sm:$0xff]
    %v130 = vld [vmem:[%s3 + $0x70] sm:$0xff]
    %v131 = vld [vmem:[%s3 + $0x78] sm:$0xff]
    %v132 = vld [vmem:[%s4] sm:$0x1]
    %v134 = vperm.slane %v132, 0
    %136 = vmatpush.msra.mxu0 %v131
    %137 = vmatpush.msra.mxu0 %v130
    %138 = vmatpush.msra.mxu0 %v129
    %139 = vmatpush.msra.mxu0 %v128
    %140 = vmatpush.msra.mxu0 %v127
    %141 = vmatpush.msra.mxu0 %v126
    %142 = vmatpush.msra.mxu0 %v125
    %143 = vmatpush.msra.mxu0 %v124
    %144 = vmatpush.msra.mxu0 %v123
    %145 = vmatpush.msra.mxu0 %v122
    %146 = vmatpush.msra.mxu0 %v121
    %147 = vmatpush.msra.mxu0 %v120
    %148 = vmatpush.msra.mxu0 %v119
    %149 = vmatpush.msra.mxu0 %v118
    %150 = vmatpush.msra.mxu0 %v117
    %151 = vmatpush.msra.mxu0 %v116
    %152 = vmatmul.f32.gmra.mxu0 %v115
    %v153 = vpop.f32.mrf.mxu0
    %v154 = vadd.f32 %v134, %v153
    %155 = vdwg.mxu0
    %v156 = vmax.f32 %v154, 0.0
    %vm157 = vcmask 523264
    %158 = vst.msk [vmem:[#allocation5] sm:$0xff] %vm157, %v156
    // Predicated region
    $region26: #{tpu_custom_call.1} parent=1 // pred_check
      _
    $region27: #{tpu_custom_call.1} parent=1 // pred_check_branch
      %160 = sbr.rel (0) target = $region29
    $region28: #{tpu_custom_call.1} parent=1 // pred_region
      %162 = vsyncadd [#allocation4], 0
      %s164 = sshll.u32 [#allocation5], 4
      %s165 = int_to_ptr.vmem [resolvable:$true] %s164
      %s166 = sshll.u32 %s5, 4
      %s167 = int_to_ptr.hbm [resolvable:$true] %s166
      %169 = dma.vmem_to_hbm [thread:$0]  %s165, 128, %s167, [#allocation4]
    $region29: #{tpu_custom_call.1} parent=1 // pred_fallthru
      _
    // Predicated region
    $region30: #{tpu_custom_call.1} parent=1 // pred_check
      _
    $region31: #{tpu_custom_call.1} parent=1 // pred_check_branch
      %171 = sbr.rel (0) target = $region33
    $region32: #{tpu_custom_call.1} parent=1 // pred_region
      %173 = dma.done [#allocation4], 128
    $region33: #{tpu_custom_call.1} parent=1 // pred_fallthru
      _
    %174 = vsyncpa [#allocation3], 1
    %175 = vsyncpa [#allocation4], 1

</llo_original>
